<compile_context>
chip_gen: v7x
topology: tpu7x:2x2x1
jax: 0.10.0
libtpu: 0.0.40
codegen_flags: <defaults>
</compile_context>

<pallas_src>
import math

import jax
import jax.numpy as jnp
from jax.experimental import pallas as pl
from jax.experimental.pallas import tpu as pltpu

# ---------------- config (small synthetic sizes) ----------------
BATCH = 2
SEQ = 8
HIDDEN = 32          # config.hidden_size
EXPERT_HIDDEN = 64   # config.expert_hidden_size
EXPERT_IDX = 0       # expert_idx % 4 == 0 -> Linear + LayerNorm + GELU specialized path
LN_EPS = 1e-5
LANE = 128


def _round_up(n, m):
    return ((n + m - 1) // m) * m


H_PAD = _round_up(HIDDEN, LANE)          # 128 (lane-dense)
E_PAD = _round_up(EXPERT_HIDDEN, LANE)   # 128 (lane-dense)


def _gelu_exact(x):
    # PyTorch nn.GELU() default: exact erf-based GELU.
    return 0.5 * x * (1.0 + jax.lax.erf(x * (1.0 / math.sqrt(2.0))))


# ---------------------------------------------------------------------------
# One-time feature probe: does this JAX build accept pipeline_mode=Buffered(1)
# (single-buffered grid-invariant operands)?  Resolved ONCE at import via a
# tiny lowering+compile; the real kernel is then built exactly once with the
# known-good configuration (no try/except around the real pallas_call).
# ---------------------------------------------------------------------------
def _probe_single_buffer_support():
    def _probe_kernel(a_ref, o_ref):
        o_ref[...] = a_ref[...]

    try:
        probe = pl.pallas_call(
            _probe_kernel,
            out_shape=jax.ShapeDtypeStruct((8, 128), jnp.float32),
            grid=(1,),
            in_specs=[pl.BlockSpec((8, 128), lambda i: (0, 0),
                                   pipeline_mode=pl.Buffered(1))],
            out_specs=pl.BlockSpec((8, 128), lambda i: (0, 0)),
        )
        jax.jit(probe).lower(
            jax.ShapeDtypeStruct((8, 128), jnp.float32)).compile()
        return True
    except Exception:  # probe only; real kernel errors are never swallowed
        return False


_SINGLE_BUFFER_WEIGHTS = _probe_single_buffer_support()


# ---------------------------------------------------------------------------
# Kernel
# ---------------------------------------------------------------------------
def expert_kernel(
    x_ref,        # [TM, H_PAD]   f32 (cast to bf16 in-kernel)
    w_up_ref,     # [H_PAD, E_PAD] bf16
    w_sp_ref,     # [E_PAD, E_PAD] bf16
    w_dn_ref,     # [E_PAD, H_PAD] bf16
    vece_ref,     # [8, E_PAD]    f32: rows 0..3 = b_up, b_sp, ln_gamma, ln_beta
    vech_ref,     # [8, H_PAD]    f32: row 0 = b_dn
    o_ref,        # [TM, H_PAD]   f32
):
    x = x_ref[...].astype(jnp.bfloat16)   # in-kernel cast: no extra HBM pass over x

    vecs_e = vece_ref[...]
    b_up = vecs_e[0:1, :]
    b_sp = vecs_e[1:2, :]
    ln_g = vecs_e[2:3, :]
    ln_b = vecs_e[3:4, :]
    b_dn = vech_ref[...][0:1, :]

    # up_proj + GELU (bf16 MXU inputs, f32 accumulation; elementwise math in f32)
    h = jnp.dot(x, w_up_ref[...], preferred_element_type=jnp.float32) + b_up
    h = _gelu_exact(h)

    # specialized: Linear(E, E) -> LayerNorm(E) -> GELU
    s = jnp.dot(h.astype(jnp.bfloat16), w_sp_ref[...],
                preferred_element_type=jnp.float32) + b_sp

    # One-pass LayerNorm statistics over the REAL expert width.  Padded lanes of
    # s are exactly zero (zero-padded weight columns / biases), so sum and
    # sum-of-squares over all lanes already equal the sums over real lanes.
    inv_e = jnp.float32(1.0 / EXPERT_HIDDEN)
    mean = jnp.sum(s, axis=-1, keepdims=True) * inv_e
    mean_sq = jnp.sum(s * s, axis=-1, keepdims=True) * inv_e
    var = mean_sq - mean * mean
    s = (s - mean) * jax.lax.rsqrt(var + LN_EPS)
    s = s * ln_g + ln_b                    # padded gamma/beta are 0 -> padded lanes re-zeroed
    h = _gelu_exact(s)

    # dropout: identity in eval mode

    # down_proj
    out = jnp.dot(h.astype(jnp.bfloat16), w_dn_ref[...],
                  preferred_element_type=jnp.float32) + b_dn
    o_ref[...] = out.astype(o_ref.dtype)


# ---------------------------------------------------------------------------
# Tiling / VMEM budgeting
# ---------------------------------------------------------------------------
def _select_token_tile(T):
    if T < 256:
        # Tiny token counts: one grid step; multiple of 16 keeps the bf16
        # intermediates sublane-packed (16 rows per bf16 vreg).
        return _round_up(T, 16)
    # Large token counts: 512-row tiles toward the HBM roofline on v5e/v6e,
    # capped so the grid has >= 2 steps and the "parallel" token axis can be
    # split across v7x's two TensorCores.
    t_pad128 = _round_up(T, 128)
    tile = min(512, (t_pad128 // 2) // 128 * 128)
    return max(128, tile)


def _vmem_limit_bytes(token_tile, weight_buffers):
    f32, bf16 = 4, 2
    weights = (H_PAD * E_PAD + E_PAD * E_PAD + E_PAD * H_PAD) * bf16 * weight_buffers
    vectors = (8 * E_PAD + 8 * H_PAD) * f32 * weight_buffers
    x_blk = token_tile * H_PAD * f32 * 2          # double-buffered input block
    o_blk = token_tile * H_PAD * f32 * 2          # double-buffered output block
    interm = token_tile * E_PAD * (f32 * 3 + bf16 * 2)  # h, s, temporaries + bf16 copies
    est = weights + vectors + x_blk + o_blk + interm
    return int(min(96 * 2**20, max(16 * 2**20, 2 * est)))


def _build_expert_call(t_pad, token_tile):
    weight_buffers = 1 if _SINGLE_BUFFER_WEIGHTS else 2

    def const_spec(shape):
        # Grid-invariant operands (weights / stacked bias+LN vectors): the block
        # never changes, so double buffering only wastes VMEM.
        if _SINGLE_BUFFER_WEIGHTS:
            return pl.BlockSpec(shape, lambda i: (0, 0), pipeline_mode=pl.Buffered(1))
        return pl.BlockSpec(shape, lambda i: (0, 0))

    return pl.pallas_call(
        expert_kernel,
        out_shape=jax.ShapeDtypeStruct((t_pad, H_PAD), jnp.float32),
        grid_spec=pltpu.PrefetchScalarGridSpec(
            num_scalar_prefetch=0,
            grid=(t_pad // token_tile,),
            in_specs=[
                pl.BlockSpec((token_tile, H_PAD), lambda i: (i, 0)),  # x (f32)
                const_spec((H_PAD, E_PAD)),   # w_up (bf16)
                const_spec((E_PAD, E_PAD)),   # w_sp (bf16)
                const_spec((E_PAD, H_PAD)),   # w_down (bf16)
                const_spec((8, E_PAD)),       # stacked b_up / b_sp / ln_gamma / ln_beta
                const_spec((8, H_PAD)),       # stacked b_down
            ],
            out_specs=pl.BlockSpec((token_tile, H_PAD), lambda i: (i, 0)),
        ),
        compiler_params=pltpu.CompilerParams(
            dimension_semantics=("parallel",),
            vmem_limit_bytes=_vmem_limit_bytes(token_tile, weight_buffers),
        ),
    )


# ---------------------------------------------------------------------------
# Wrapper
# ---------------------------------------------------------------------------
def _pad2(a, rows, cols):
    return jnp.pad(a, ((0, rows - a.shape[0]), (0, cols - a.shape[1])))


def prepare_params(params):
    """One-time weight preparation: zero-pad to lane-dense shapes, cast matmul
    operands to bf16, stack the per-feature f32 vectors.  Call once, reuse."""
    w_up, b_up, w_sp, b_sp, ln_g, ln_b, w_dn, b_dn = params
    bf16 = jnp.bfloat16
    w_up_p = _pad2(w_up, H_PAD, E_PAD).astype(bf16)
    w_sp_p = _pad2(w_sp, E_PAD, E_PAD).astype(bf16)
    w_dn_p = _pad2(w_dn, E_PAD, H_PAD).astype(bf16)
    vecs_e = jnp.concatenate(
        [_pad2(b_up, 1, E_PAD), _pad2(b_sp, 1, E_PAD),
         _pad2(ln_g, 1, E_PAD), _pad2(ln_b, 1, E_PAD),
         jnp.zeros((4, E_PAD), jnp.float32)], axis=0)          # (8, E_PAD)
    vecs_h = jnp.concatenate(
        [_pad2(b_dn, 1, H_PAD), jnp.zeros((7, H_PAD), jnp.float32)], axis=0)  # (8, H_PAD)
    return (w_up_p, w_sp_p, w_dn_p, vecs_e, vecs_h)


def _expert_forward_impl(x, prepared):
    """x: [B, S, H] float32, prepared: output of prepare_params -> [B, S, H] f32."""
    B, S, H = x.shape
    T = B * S
    token_tile = _select_token_tile(T)
    t_pad = _round_up(T, token_tile)

    # Only x is padded on the per-call path (fused by XLA under jit).
    x_p = _pad2(x.reshape(T, H), t_pad, H_PAD)

    out_p = _build_expert_call(t_pad, token_tile)(x_p, *prepared)
    return out_p[:T, :H].reshape(B, S, H)


expert_forward = jax.jit(_expert_forward_impl)


# ---------------------------------------------------------------------------
# Synthetic parameters + pure-JAX reference
# ---------------------------------------------------------------------------
def init_params(key, hidden, expert_hidden):
    """Deterministic synthetic parameter init (shapes match nn.Linear / LayerNorm)."""
    ks = jax.random.split(key, 6)

    def linear(k, fan_in, fan_out):
        bound = 1.0 / math.sqrt(fan_in)
        kw, kb = jax.random.split(k)
        w = jax.random.uniform(kw, (fan_in, fan_out), jnp.float32, -bound, bound)
        b = jax.random.uniform(kb, (1, fan_out), jnp.float32, -bound, bound)
        return w, b

    w_up, b_up = linear(ks[0], hidden, expert_hidden)            # up_proj
    w_sp, b_sp = linear(ks[1], expert_hidden, expert_hidden)     # specialized Linear
    ln_g = jnp.ones((1, expert_hidden), jnp.float32)             # LayerNorm weight
    ln_b = jnp.zeros((1, expert_hidden), jnp.float32)            # LayerNorm bias
    w_dn, b_dn = linear(ks[2], expert_hidden, hidden)            # down_proj
    return (w_up, b_up, w_sp, b_sp, ln_g, ln_b, w_dn, b_dn)


def reference_forward(x, params, matmul_dtype=jnp.float32):
    """Pure-JAX reference (PyTorch eval-mode math).

    matmul_dtype=jnp.bfloat16 mirrors the kernel's bf16-input / f32-accumulate
    matmuls so implementation errors can be checked with a tight tolerance.
    Uses two-pass LayerNorm stats, so it also cross-checks the kernel's
    one-pass variance.
    """
    w_up, b_up, w_sp, b_sp, ln_g, ln_b, w_dn, b_dn = params

    def mm(a, w):
        return jnp.dot(a.astype(matmul_dtype), w.astype(matmul_dtype),
                       preferred_element_type=jnp.float32)

    h = _gelu_exact(mm(x, w_up) + b_up)
    s = mm(h, w_sp) + b_sp
    mean = jnp.mean(s, axis=-1, keepdims=True)
    var = jnp.mean(jnp.square(s - mean), axis=-1, keepdims=True)
    s = (s - mean) * jax.lax.rsqrt(var + LN_EPS) * ln_g + ln_b
    h = _gelu_exact(s)
    return mm(h, w_dn) + b_dn


if __name__ == "__main__":
    key = jax.random.PRNGKey(0)
    kx, kp = jax.random.split(key)

    x = jax.random.normal(kx, (BATCH, SEQ, HIDDEN), jnp.float32)
    params = init_params(kp, HIDDEN, EXPERT_HIDDEN)
    prepared = prepare_params(params)   # one-time padding / bf16 cast of weights

    out = jax.block_until_ready(expert_forward(x, prepared))
    assert out.shape == (BATCH, SEQ, HIDDEN)

    # Tight check vs a reference that mirrors the kernel's mixed precision
    # (isolates kernel implementation errors from bf16 rounding).
    ref_bf16 = reference_forward(x, params, matmul_dtype=jnp.bfloat16)
    assert jnp.allclose(out, ref_bf16, atol=1e-3, rtol=1e-3), \
        "mismatch vs bf16-matmul reference"

    # Loose semantic sanity check vs the full-f32 PyTorch-equivalent math
    # (bf16 MXU inputs loosen the tolerance; keep f32 MXU inputs if strict
    # parity with the PyTorch module is required).
    ref_f32 = reference_forward(x, params, matmul_dtype=jnp.float32)
    assert jnp.allclose(out, ref_f32, atol=1e-1, rtol=1e-1), \
        "mismatch vs f32 reference"

    print("KERNEL_OK")
</pallas_src>

<mosaic_0001>
module attributes {stable_mosaic.version = 11 : i64} {
  func.func @expert_kernel(%arg0: i32, %arg1: memref<16x128xf32, #tpu.memory_space<vmem>>, %arg2: memref<128x128xbf16, #tpu.memory_space<vmem>>, %arg3: memref<128x128xbf16, #tpu.memory_space<vmem>>, %arg4: memref<128x128xbf16, #tpu.memory_space<vmem>>, %arg5: memref<8x128xf32, #tpu.memory_space<vmem>>, %arg6: memref<8x128xf32, #tpu.memory_space<vmem>>, %arg7: memref<16x128xf32, #tpu.memory_space<vmem>>) attributes {dimension_semantics = [#tpu.dimension_semantics<parallel>], iteration_bounds = array<i64: 1>, scalar_prefetch = 0 : i64, scratch_operands = 0 : i64, tpu.core_type = #tpu.core_type<tc>, window_params = [{transform_indices = @transform_0, window_bounds = array<i64: 16, 128>}, {pipeline_mode = #tpu.pipeline_mode<synchronous>, transform_indices = @transform_1, window_bounds = array<i64: 128, 128>}, {pipeline_mode = #tpu.pipeline_mode<synchronous>, transform_indices = @transform_2, window_bounds = array<i64: 128, 128>}, {pipeline_mode = #tpu.pipeline_mode<synchronous>, transform_indices = @transform_3, window_bounds = array<i64: 128, 128>}, {pipeline_mode = #tpu.pipeline_mode<synchronous>, transform_indices = @transform_4, window_bounds = array<i64: 8, 128>}, {pipeline_mode = #tpu.pipeline_mode<synchronous>, transform_indices = @transform_5, window_bounds = array<i64: 8, 128>}, {transform_indices = @transform_6, window_bounds = array<i64: 16, 128>}]} {
    %c0 = arith.constant 0 : index
    %c0_0 = arith.constant 0 : index
    %0 = vector.load %arg1[%c0, %c0_0] : memref<16x128xf32, #tpu.memory_space<vmem>>, vector<16x128xf32>
    %1 = arith.truncf %0 : vector<16x128xf32> to vector<16x128xbf16>
    %c0_1 = arith.constant 0 : index
    %c0_2 = arith.constant 0 : index
    %2 = vector.load %arg5[%c0_1, %c0_2] : memref<8x128xf32, #tpu.memory_space<vmem>>, vector<8x128xf32>
    %3 = vector.extract_strided_slice %2 {offsets = [0, 0], sizes = [1, 128], strides = [1, 1]} : vector<8x128xf32> to vector<1x128xf32>
    %4 = vector.extract_strided_slice %2 {offsets = [1, 0], sizes = [1, 128], strides = [1, 1]} : vector<8x128xf32> to vector<1x128xf32>
    %5 = vector.extract_strided_slice %2 {offsets = [2, 0], sizes = [1, 128], strides = [1, 1]} : vector<8x128xf32> to vector<1x128xf32>
    %6 = vector.extract_strided_slice %2 {offsets = [3, 0], sizes = [1, 128], strides = [1, 1]} : vector<8x128xf32> to vector<1x128xf32>
    %c0_3 = arith.constant 0 : index
    %c0_4 = arith.constant 0 : index
    %7 = vector.load %arg6[%c0_3, %c0_4] : memref<8x128xf32, #tpu.memory_space<vmem>>, vector<8x128xf32>
    %8 = vector.extract_strided_slice %7 {offsets = [0, 0], sizes = [1, 128], strides = [1, 1]} : vector<8x128xf32> to vector<1x128xf32>
    %c0_5 = arith.constant 0 : index
    %c0_6 = arith.constant 0 : index
    %9 = vector.load %arg2[%c0_5, %c0_6] : memref<128x128xbf16, #tpu.memory_space<vmem>>, vector<128x128xbf16>
    %cst = arith.constant dense<0.000000e+00> : vector<16x128xf32>
    %10 = tpu.matmul %1, %9, %cst {dimension_numbers = #tpu.dot_dimension_numbers<[1], [0], [0], [1], [0, 0, 1, 1], [], []>} : vector<16x128xbf16>, vector<128x128xbf16>, vector<16x128xf32> -> vector<16x128xf32>
    %11 = vector.broadcast %3 : vector<1x128xf32> to vector<16x128xf32>
    %12 = arith.addf %10, %11 : vector<16x128xf32>
    %cst_7 = arith.constant 5.000000e-01 : f32
    %13 = vector.broadcast %cst_7 : f32 to vector<16x128xf32>
    %14 = arith.mulf %13, %12 : vector<16x128xf32>
    %cst_8 = arith.constant 0.707106769 : f32
    %15 = vector.broadcast %cst_8 : f32 to vector<16x128xf32>
    %16 = arith.mulf %12, %15 : vector<16x128xf32>
    %17 = math.erf %16 : vector<16x128xf32>
    %cst_9 = arith.constant 1.000000e+00 : f32
    %18 = vector.broadcast %cst_9 : f32 to vector<16x128xf32>
    %19 = arith.addf %18, %17 : vector<16x128xf32>
    %20 = arith.mulf %14, %19 : vector<16x128xf32>
    %21 = arith.truncf %20 : vector<16x128xf32> to vector<16x128xbf16>
    %c0_10 = arith.constant 0 : index
    %c0_11 = arith.constant 0 : index
    %22 = vector.load %arg3[%c0_10, %c0_11] : memref<128x128xbf16, #tpu.memory_space<vmem>>, vector<128x128xbf16>
    %cst_12 = arith.constant dense<0.000000e+00> : vector<16x128xf32>
    %23 = tpu.matmul %21, %22, %cst_12 {dimension_numbers = #tpu.dot_dimension_numbers<[1], [0], [0], [1], [0, 0, 1, 1], [], []>} : vector<16x128xbf16>, vector<128x128xbf16>, vector<16x128xf32> -> vector<16x128xf32>
    %24 = vector.broadcast %4 : vector<1x128xf32> to vector<16x128xf32>
    %25 = arith.addf %23, %24 : vector<16x128xf32>
    %cst_13 = arith.constant dense<0.000000e+00> : vector<16xf32>
    %26 = vector.multi_reduction <add>, %25, %cst_13 [1] : vector<16x128xf32> to vector<16xf32>
    %27 = vector.shape_cast %26 : vector<16xf32> to vector<16x1xf32>
    %cst_14 = arith.constant 1.562500e-02 : f32
    %28 = vector.broadcast %cst_14 : f32 to vector<16x1xf32>
    %29 = arith.mulf %27, %28 : vector<16x1xf32>
    %30 = arith.mulf %25, %25 : vector<16x128xf32>
    %cst_15 = arith.constant dense<0.000000e+00> : vector<16xf32>
    %31 = vector.multi_reduction <add>, %30, %cst_15 [1] : vector<16x128xf32> to vector<16xf32>
    %32 = vector.shape_cast %31 : vector<16xf32> to vector<16x1xf32>
    %cst_16 = arith.constant 1.562500e-02 : f32
    %33 = vector.broadcast %cst_16 : f32 to vector<16x1xf32>
    %34 = arith.mulf %32, %33 : vector<16x1xf32>
    %35 = arith.mulf %29, %29 : vector<16x1xf32>
    %36 = arith.subf %34, %35 : vector<16x1xf32>
    %37 = vector.broadcast %29 : vector<16x1xf32> to vector<16x128xf32>
    %38 = arith.subf %25, %37 : vector<16x128xf32>
    %cst_17 = arith.constant 9.99999974E-6 : f32
    %39 = vector.broadcast %cst_17 : f32 to vector<16x1xf32>
    %40 = arith.addf %36, %39 : vector<16x1xf32>
    %41 = math.rsqrt %40 : vector<16x1xf32>
    %42 = vector.broadcast %41 : vector<16x1xf32> to vector<16x128xf32>
    %43 = arith.mulf %38, %42 : vector<16x128xf32>
    %44 = vector.broadcast %5 : vector<1x128xf32> to vector<16x128xf32>
    %45 = arith.mulf %43, %44 : vector<16x128xf32>
    %46 = vector.broadcast %6 : vector<1x128xf32> to vector<16x128xf32>
    %47 = arith.addf %45, %46 : vector<16x128xf32>
    %cst_18 = arith.constant 5.000000e-01 : f32
    %48 = vector.broadcast %cst_18 : f32 to vector<16x128xf32>
    %49 = arith.mulf %48, %47 : vector<16x128xf32>
    %cst_19 = arith.constant 0.707106769 : f32
    %50 = vector.broadcast %cst_19 : f32 to vector<16x128xf32>
    %51 = arith.mulf %47, %50 : vector<16x128xf32>
    %52 = math.erf %51 : vector<16x128xf32>
    %cst_20 = arith.constant 1.000000e+00 : f32
    %53 = vector.broadcast %cst_20 : f32 to vector<16x128xf32>
    %54 = arith.addf %53, %52 : vector<16x128xf32>
    %55 = arith.mulf %49, %54 : vector<16x128xf32>
    %56 = arith.truncf %55 : vector<16x128xf32> to vector<16x128xbf16>
    %c0_21 = arith.constant 0 : index
    %c0_22 = arith.constant 0 : index
    %57 = vector.load %arg4[%c0_21, %c0_22] : memref<128x128xbf16, #tpu.memory_space<vmem>>, vector<128x128xbf16>
    %cst_23 = arith.constant dense<0.000000e+00> : vector<16x128xf32>
    %58 = tpu.matmul %56, %57, %cst_23 {dimension_numbers = #tpu.dot_dimension_numbers<[1], [0], [0], [1], [0, 0, 1, 1], [], []>} : vector<16x128xbf16>, vector<128x128xbf16>, vector<16x128xf32> -> vector<16x128xf32>
    %59 = vector.broadcast %8 : vector<1x128xf32> to vector<16x128xf32>
    %60 = arith.addf %58, %59 : vector<16x128xf32>
    %c0_24 = arith.constant 0 : index
    %c0_25 = arith.constant 0 : index
    %61 = vector.load %arg7[%c0_24, %c0_25] : memref<16x128xf32, #tpu.memory_space<vmem>>, vector<16x128xf32>
    tpu.vector_store %arg7[%c0_24, %c0_25], %60 {strides = array<i32>} : memref<16x128xf32, #tpu.memory_space<vmem>>, vector<16x128xf32>,
    return
  }
  func.func @transform_0(%arg0: i32) -> (i32, i32) {
    %c0_i32 = arith.constant 0 : i32
    %c0_i32_0 = arith.constant 0 : i32
    return %arg0, %c0_i32 : i32, i32
  }
  func.func @transform_1(%arg0: i32) -> (i32, i32) {
    %c0_i32 = arith.constant 0 : i32
    %c0_i32_0 = arith.constant 0 : i32
    %c0_i32_1 = arith.constant 0 : i32
    return %c0_i32, %c0_i32_0 : i32, i32
  }
  func.func @transform_2(%arg0: i32) -> (i32, i32) {
    %c0_i32 = arith.constant 0 : i32
    %c0_i32_0 = arith.constant 0 : i32
    %c0_i32_1 = arith.constant 0 : i32
    return %c0_i32, %c0_i32_0 : i32, i32
  }
  func.func @transform_3(%arg0: i32) -> (i32, i32) {
    %c0_i32 = arith.constant 0 : i32
    %c0_i32_0 = arith.constant 0 : i32
    %c0_i32_1 = arith.constant 0 : i32
    return %c0_i32, %c0_i32_0 : i32, i32
  }
  func.func @transform_4(%arg0: i32) -> (i32, i32) {
    %c0_i32 = arith.constant 0 : i32
    %c0_i32_0 = arith.constant 0 : i32
    %c0_i32_1 = arith.constant 0 : i32
    return %c0_i32, %c0_i32_0 : i32, i32
  }
  func.func @transform_5(%arg0: i32) -> (i32, i32) {
    %c0_i32 = arith.constant 0 : i32
    %c0_i32_0 = arith.constant 0 : i32
    %c0_i32_1 = arith.constant 0 : i32
    return %c0_i32, %c0_i32_0 : i32, i32
  }
  func.func @transform_6(%arg0: i32) -> (i32, i32) {
    %c0_i32 = arith.constant 0 : i32
    %c0_i32_0 = arith.constant 0 : i32
    return %arg0, %c0_i32 : i32, i32
  }
}

</mosaic_0001>

<llo_original>
// kernel: _expert_forward_impl.1
$region0: #{_expert_forward_impl.1}
  #allocation0 [shape = 'u32[]', space=smem, size = 0x4, offset = 0x4, fixed_abs, tag = 'smem constant byte address 0x4 - core index']
  #allocation1 [shape = 'u32[144,128]{1,0:T(1,128)}', space=vmem, size = 0x12000, scoped, tag = 'internal scratch']
  %s0 = inlined_call_operand.vmem [shape: f32[16,128], index: 0, kind: input, shape index: {}]
  %s1 = inlined_call_operand.hbm [shape: bf16[128,128], index: 1, kind: input, shape index: {}]
  %s2 = inlined_call_operand.hbm [shape: bf16[128,128], index: 2, kind: input, shape index: {}]
  %s3 = inlined_call_operand.hbm [shape: bf16[128,128], index: 3, kind: input, shape index: {}]
  %s4 = inlined_call_operand.vmem [shape: f32[8,128], index: 4, kind: input, shape index: {}]
  %s5 = inlined_call_operand.vmem [shape: f32[8,128], index: 5, kind: input, shape index: {}]
  %s6 = inlined_call_operand.vmem [shape: f32[16,128], index: 6, kind: output, shape index: {}]
  %s7 = sld [smem:[#allocation0]]
  $region46: #{_expert_forward_impl.1} parent=0
    _
  %s9 = ssub.s32 1, %s7
  %s10 = scalar_select 0, %s9, %s7
  $region1: #{_expert_forward_impl.1} parent=0
    #allocation2 [shape = 'u8[32768]{0}', space=vmem, size = 0x8000, scoped, tag = 'input window, operand 1, single buffered']
    #allocation3 [shape = 's32[1]{0}', space=sflag, size = 0x4, scoped, tag = 'scoped memory for _expert_forward_impl.1']
    #allocation4 [shape = 'u8[32768]{0}', space=vmem, size = 0x8000, scoped, tag = 'input window, operand 2, single buffered']
    #allocation5 [shape = 's32[1]{0}', space=sflag, size = 0x4, scoped, tag = 'scoped memory for _expert_forward_impl.1']
    #allocation6 [shape = 'u8[32768]{0}', space=vmem, size = 0x8000, scoped, tag = 'input window, operand 3, single buffered']
    %11 = vsyncpa [#allocation3], 0
    %12 = vsyncpa [#allocation5], 0
    // Predicated region
    $region2: #{_expert_forward_impl.1} parent=1 // pred_check
      _
    $region3: #{_expert_forward_impl.1} parent=1 // pred_check_branch
      %14 = sbr.rel (0) target = $region5
    $region4: #{_expert_forward_impl.1} parent=1 // pred_region
      _
    $region5: #{_expert_forward_impl.1} parent=1 // pred_fallthru
      _
    // Predicated region
    $region6: #{_expert_forward_impl.1} parent=1 // pred_check
      _
    $region7: #{_expert_forward_impl.1} parent=1 // pred_check_branch
      %16 = sbr.rel (0) target = $region9
    $region8: #{_expert_forward_impl.1} parent=1 // pred_region
      %s18 = ssub.s32 1024, 1024
      %19 = vsyncadd [#allocation3], %s18
      %s20 = sshll.u32 [#allocation2], 4
      %s21 = int_to_ptr.vmem [resolvable:$true] %s20
      %26 = dma.hbm_to_vmem [thread:$0]  %s1, 1024, %s21, [#allocation3], 64, 64, 4
    $region9: #{_expert_forward_impl.1} parent=1 // pred_fallthru
      _
    // Predicated region
    $region10: #{_expert_forward_impl.1} parent=1 // pred_check
      _
    $region11: #{_expert_forward_impl.1} parent=1 // pred_check_branch
      %28 = sbr.rel (0) target = $region13
    $region12: #{_expert_forward_impl.1} parent=1 // pred_region
      %s30 = ssub.s32 1024, 1024
      %31 = vsyncadd [#allocation5], %s30
      %s32 = sshll.u32 [#allocation4], 4
      %s33 = int_to_ptr.vmem [resolvable:$true] %s32
      %38 = dma.hbm_to_vmem [thread:$0]  %s2, 1024, %s33, [#allocation5], 64, 64, 4
    $region13: #{_expert_forward_impl.1} parent=1 // pred_fallthru
      _
    // Predicated region
    $region14: #{_expert_forward_impl.1} parent=1 // pred_check
      _
    $region15: #{_expert_forward_impl.1} parent=1 // pred_check_branch
      %40 = sbr.rel (0) target = $region17
    $region16: #{_expert_forward_impl.1} parent=1 // pred_region
      %s42 = ssub.s32 1024, 1024
      %43 = vsyncadd [#allocation5], %s42
      %s44 = sshll.u32 [#allocation6], 4
      %s45 = int_to_ptr.vmem [resolvable:$true] %s44
      %50 = dma.hbm_to_vmem [thread:$0]  %s3, 1024, %s45, [#allocation5], 64, 64, 4
    $region17: #{_expert_forward_impl.1} parent=1 // pred_fallthru
      _
    // Predicated region
    $region18: #{_expert_forward_impl.1} parent=1 // pred_check
      _
    $region19: #{_expert_forward_impl.1} parent=1 // pred_check_branch
      %52 = sbr.rel (0) target = $region21
    $region20: #{_expert_forward_impl.1} parent=1 // pred_region
      _
    $region21: #{_expert_forward_impl.1} parent=1 // pred_fallthru
      _
    // Predicated region
    $region22: #{_expert_forward_impl.1} parent=1 // pred_check
      _
    $region23: #{_expert_forward_impl.1} parent=1 // pred_check_branch
      %54 = sbr.rel (0) target = $region25
    $region24: #{_expert_forward_impl.1} parent=1 // pred_region
      _
    $region25: #{_expert_forward_impl.1} parent=1 // pred_fallthru
      _
    // Predicated region
    $region26: #{_expert_forward_impl.1} parent=1 // pred_check
      _
    $region27: #{_expert_forward_impl.1} parent=1 // pred_check_branch
      %56 = sbr.rel (0) target = $region29
    $region28: #{_expert_forward_impl.1} parent=1 // pred_region
      %57 = dma.done [#allocation3], 1024
    $region29: #{_expert_forward_impl.1} parent=1 // pred_fallthru
      _
    // Predicated region
    $region30: #{_expert_forward_impl.1} parent=1 // pred_check
      _
    $region31: #{_expert_forward_impl.1} parent=1 // pred_check_branch
      %59 = sbr.rel (0) target = $region33
    $region32: #{_expert_forward_impl.1} parent=1 // pred_region
      %60 = dma.done [#allocation5], 1024
    $region33: #{_expert_forward_impl.1} parent=1 // pred_fallthru
      _
    // Predicated region
    $region34: #{_expert_forward_impl.1} parent=1 // pred_check
      _
    $region35: #{_expert_forward_impl.1} parent=1 // pred_check_branch
      %62 = sbr.rel (0) target = $region37
    $region36: #{_expert_forward_impl.1} parent=1 // pred_region
      %63 = dma.done [#allocation5], 1024
    $region37: #{_expert_forward_impl.1} parent=1 // pred_fallthru
      _
    %v65 = vld [vmem:[%s0] sm:$0xff]
    %v66 = vld [vmem:[%s0 + $0x8] sm:$0xff]
    %v67 = vpack.c.bf16 %v66, %v65
    %v68 = vld [vmem:[%s4] sm:$0xff]
    %v69 = vld [vmem:[%s5] sm:$0xff]
    %v70 = vld [vmem:[#allocation2] sm:$0xf]
    %v71 = vld [vmem:[#allocation2 + $0x4] sm:$0xf]
    %v72 = vld [vmem:[#allocation2 + $0x8] sm:$0xf]
    %v73 = vld [vmem:[#allocation2 + $0xc] sm:$0xf]
    %v74 = vld [vmem:[#allocation2 + $0x10] sm:$0xf]
    %v75 = vld [vmem:[#allocation2 + $0x14] sm:$0xf]
    %v76 = vld [vmem:[#allocation2 + $0x18] sm:$0xf]
    %v77 = vld [vmem:[#allocation2 + $0x1c] sm:$0xf]
    %v78 = vld [vmem:[#allocation2 + $0x20] sm:$0xf]
    %v79 = vld [vmem:[#allocation2 + $0x24] sm:$0xf]
    %v80 = vld [vmem:[#allocation2 + $0x28] sm:$0xf]
    %v81 = vld [vmem:[#allocation2 + $0x2c] sm:$0xf]
    %v82 = vld [vmem:[#allocation2 + $0x30] sm:$0xf]
    %v83 = vld [vmem:[#allocation2 + $0x34] sm:$0xf]
    %v84 = vld [vmem:[#allocation2 + $0x38] sm:$0xf]
    %v85 = vld [vmem:[#allocation2 + $0x3c] sm:$0xf]
    %v86 = vlaneseq
    %v87 = vshrl.u32 %v86, 7
    %v88 = vsub.s32 0, %v87
    %v89 = vrot.slane %v68, %v88
    %v106 = vunpack.c.l.b16 %v70
    %v107 = vunpack.c.l.b16 %v71
    %v108 = vunpack.c.l.b16 %v72
    %v109 = vunpack.c.l.b16 %v73
    %v110 = vunpack.c.l.b16 %v74
    %v111 = vunpack.c.l.b16 %v75
    %v112 = vunpack.c.l.b16 %v76
    %v113 = vunpack.c.l.b16 %v77
    %v114 = vunpack.c.l.b16 %v78
    %v115 = vunpack.c.l.b16 %v79
    %v116 = vunpack.c.l.b16 %v80
    %v117 = vunpack.c.l.b16 %v81
    %v118 = vunpack.c.l.b16 %v82
    %v119 = vunpack.c.l.b16 %v83
    %v120 = vunpack.c.l.b16 %v84
    %v121 = vunpack.c.l.b16 %v85
    %v122 = vpack.c.b16 %v107, %v106
    %v123 = vpack.c.b16 %v109, %v108
    %v124 = vpack.c.b16 %v111, %v110
    %v125 = vpack.c.b16 %v113, %v112
    %v126 = vpack.c.b16 %v115, %v114
    %v127 = vpack.c.b16 %v117, %v116
    %v128 = vpack.c.b16 %v119, %v118
    %v129 = vpack.c.b16 %v121, %v120
    %138 = vmatprep.subr.bf16.mxu0 0
    %139 = vmatpush1.bf16.msra.mxu0 %v122
    %140 = vmatprep.subr.bf16.mxu0 0
    %141 = vmatpush1.bf16.msra.mxu0 %v123
    %142 = vmatprep.subr.bf16.mxu0 0
    %143 = vmatpush1.bf16.msra.mxu0 %v124
    %144 = vmatprep.subr.bf16.mxu0 0
    %145 = vmatpush1.bf16.msra.mxu0 %v125
    %146 = vmatprep.subr.bf16.mxu0 0
    %147 = vmatpush1.bf16.msra.mxu0 %v126
    %148 = vmatprep.subr.bf16.mxu0 0
    %149 = vmatpush1.bf16.msra.mxu0 %v127
    %150 = vmatprep.subr.bf16.mxu0 0
    %151 = vmatpush1.bf16.msra.mxu0 %v128
    %152 = vmatprep.subr.bf16.mxu0 0
    %153 = vmatpush1.bf16.msra.mxu0 %v129
    %154 = vmatprep.subr.bf16.mxu0 0
    %155 = vmatpush1.bf16.msra.mxu0 0
    %156 = vmatprep.subr.bf16.mxu0 0
    %157 = vmatpush1.bf16.msra.mxu0 0
    %158 = vmatprep.subr.bf16.mxu0 0
    %159 = vmatpush1.bf16.msra.mxu0 0
    %160 = vmatprep.subr.bf16.mxu0 0
    %161 = vmatpush1.bf16.msra.mxu0 0
    %162 = vmatprep.subr.bf16.mxu0 0
    %163 = vmatpush1.bf16.msra.mxu0 0
    %164 = vmatprep.subr.bf16.mxu0 0
    %165 = vmatpush1.bf16.msra.mxu0 0
    %166 = vmatprep.subr.bf16.mxu0 0
    %167 = vmatpush1.bf16.msra.mxu0 0
    %168 = vmatprep.subr.bf16.mxu0 0
    %169 = vmatpush1.bf16.msra.mxu0 0
    %170 = vmatprep.mubr.bf16.mxu0 0
    %171 = vmatmul.mubr.bf16.gmra.mrb[0].mxu0 %v67
    %v172 = vpop.f32.mrb[0].mxu0
    %v173 = vadd.f32 %v89, %v172
    %v174 = vpop.f32.mrb[0].mxu0
    %v175 = vpop.f32.mrb[0].mxu0
    %v176 = vadd.f32 %v89, %v175
    %v177 = vpop.f32.mrb[0].mxu0
    %178 = vdwg.mxu0
    %v179 = vmul.f32 %v173, 0.5
    %v180 = vmul.f32 %v176, 0.5
    %v181 = vmul.f32 %v173, 0.70710677
    %v182 = vmul.f32 %v176, 0.70710677
    %v183 = verf.f32.pop %v181
    %v184 = verf.f32.pop %v182
    %v185 = vadd.f32 %v183, 1.0
    %v186 = vadd.f32 %v184, 1.0
    %v187 = vmul.f32 %v179, %v185
    %v188 = vmul.f32 %v180, %v186
    %v189 = vpack.c.bf16 %v188, %v187
    %v190 = vld [vmem:[#allocation4] sm:$0xf]
    %v191 = vld [vmem:[#allocation4 + $0x4] sm:$0xf]
    %v192 = vld [vmem:[#allocation4 + $0x8] sm:$0xf]
    %v193 = vld [vmem:[#allocation4 + $0xc] sm:$0xf]
    %v194 = vld [vmem:[#allocation4 + $0x10] sm:$0xf]
    %v195 = vld [vmem:[#allocation4 + $0x14] sm:$0xf]
    %v196 = vld [vmem:[#allocation4 + $0x18] sm:$0xf]
    %v197 = vld [vmem:[#allocation4 + $0x1c] sm:$0xf]
    %v198 = vld [vmem:[#allocation4 + $0x20] sm:$0xf]
    %v199 = vld [vmem:[#allocation4 + $0x24] sm:$0xf]
    %v200 = vld [vmem:[#allocation4 + $0x28] sm:$0xf]
    %v201 = vld [vmem:[#allocation4 + $0x2c] sm:$0xf]
    %v202 = vld [vmem:[#allocation4 + $0x30] sm:$0xf]
    %v203 = vld [vmem:[#allocation4 + $0x34] sm:$0xf]
    %v204 = vld [vmem:[#allocation4 + $0x38] sm:$0xf]
    %v205 = vld [vmem:[#allocation4 + $0x3c] sm:$0xf]
    %v206 = vlaneseq
    %v207 = vshrl.u32 %v206, 7
    %v208 = vsub.s32 1, %v207
    %v209 = vrot.slane %v68, %v208
    %v226 = vunpack.c.l.b16 %v190
    %v227 = vunpack.c.l.b16 %v191
    %v228 = vunpack.c.l.b16 %v192
    %v229 = vunpack.c.l.b16 %v193
    %v230 = vunpack.c.l.b16 %v194
    %v231 = vunpack.c.l.b16 %v195
    %v232 = vunpack.c.l.b16 %v196
    %v233 = vunpack.c.l.b16 %v197
    %v234 = vunpack.c.l.b16 %v198
    %v235 = vunpack.c.l.b16 %v199
    %v236 = vunpack.c.l.b16 %v200
    %v237 = vunpack.c.l.b16 %v201
    %v238 = vunpack.c.l.b16 %v202
    %v239 = vunpack.c.l.b16 %v203
    %v240 = vunpack.c.l.b16 %v204
    %v241 = vunpack.c.l.b16 %v205
    %v242 = vpack.c.b16 %v227, %v226
    %v243 = vpack.c.b16 %v229, %v228
    %v244 = vpack.c.b16 %v231, %v230
    %v245 = vpack.c.b16 %v233, %v232
    %v246 = vpack.c.b16 %v235, %v234
    %v247 = vpack.c.b16 %v237, %v236
    %v248 = vpack.c.b16 %v239, %v238
    %v249 = vpack.c.b16 %v241, %v240
    %258 = vmatprep.subr.bf16.mxu0 0
    %259 = vmatpush1.bf16.msra.mxu0 %v242
    %260 = vmatprep.subr.bf16.mxu0 0
    %261 = vmatpush1.bf16.msra.mxu0 %v243
    %262 = vmatprep.subr.bf16.mxu0 0
    %263 = vmatpush1.bf16.msra.mxu0 %v244
    %264 = vmatprep.subr.bf16.mxu0 0
    %265 = vmatpush1.bf16.msra.mxu0 %v245
    %266 = vmatprep.subr.bf16.mxu0 0
    %267 = vmatpush1.bf16.msra.mxu0 %v246
    %268 = vmatprep.subr.bf16.mxu0 0
    %269 = vmatpush1.bf16.msra.mxu0 %v247
    %270 = vmatprep.subr.bf16.mxu0 0
    %271 = vmatpush1.bf16.msra.mxu0 %v248
    %272 = vmatprep.subr.bf16.mxu0 0
    %273 = vmatpush1.bf16.msra.mxu0 %v249
    %274 = vmatprep.subr.bf16.mxu0 0
    %275 = vmatpush1.bf16.msra.mxu0 0
    %276 = vmatprep.subr.bf16.mxu0 0
    %277 = vmatpush1.bf16.msra.mxu0 0
    %278 = vmatprep.subr.bf16.mxu0 0
    %279 = vmatpush1.bf16.msra.mxu0 0
    %280 = vmatprep.subr.bf16.mxu0 0
    %281 = vmatpush1.bf16.msra.mxu0 0
    %282 = vmatprep.subr.bf16.mxu0 0
    %283 = vmatpush1.bf16.msra.mxu0 0
    %284 = vmatprep.subr.bf16.mxu0 0
    %285 = vmatpush1.bf16.msra.mxu0 0
    %286 = vmatprep.subr.bf16.mxu0 0
    %287 = vmatpush1.bf16.msra.mxu0 0
    %288 = vmatprep.subr.bf16.mxu0 0
    %289 = vmatpush1.bf16.msra.mxu0 0
    %290 = vmatprep.mubr.bf16.mxu0 0
    %291 = vmatmul.mubr.bf16.gmra.mrb[0].mxu0 %v189
    %v292 = vpop.f32.mrb[0].mxu0
    %v293 = vadd.f32 %v209, %v292
    %v294 = vpop.f32.mrb[0].mxu0
    %v295 = vpop.f32.mrb[0].mxu0
    %v296 = vadd.f32 %v209, %v295
    %v297 = vpop.f32.mrb[0].mxu0
    %298 = vdwg.mxu0
    %299 = vadd.xlane.f32.xlu0 %v293
    %v300 = vpop.xlane.xlu0 %299
    %301 = vadd.xlane.f32.xlu0 %v296
    %v302 = vpop.xlane.xlu0 %301
    %v303 = vmul.f32 %v300, 0.015625
    %v304 = vmul.f32 %v302, 0.015625
    %v305 = vmul.f32 %v293, %v293
    %v306 = vmul.f32 %v296, %v296
    %307 = vadd.xlane.f32.xlu0 %v305
    %v308 = vpop.xlane.xlu0 %307
    %309 = vadd.xlane.f32.xlu0 %v306
    %v310 = vpop.xlane.xlu0 %309
    %v311 = vmul.f32 %v308, 0.015625
    %v312 = vmul.f32 %v310, 0.015625
    %v313 = vmul.f32 %v303, %v303
    %v314 = vmul.f32 %v304, %v304
    %v315 = vsub.f32 %v311, %v313
    %v316 = vsub.f32 %v312, %v314
    %v317 = vsub.f32 %v293, %v303
    %v318 = vsub.f32 %v296, %v304
    %v319 = vadd.f32 %v315, 1e-05
    %v320 = vadd.f32 %v316, 1e-05
    %v321 = vrsqrt.pop %v319
    %v322 = vrsqrt.pop %v320
    %v323 = vmul.f32 %v317, %v321
    %v324 = vmul.f32 %v318, %v322
    %v325 = vlaneseq
    %v326 = vshrl.u32 %v325, 7
    %v327 = vsub.s32 2, %v326
    %v328 = vrot.slane %v68, %v327
    %v329 = vmul.f32 %v323, %v328
    %v330 = vmul.f32 %v324, %v328
    %v331 = vlaneseq
    %v332 = vshrl.u32 %v331, 7
    %v333 = vsub.s32 3, %v332
    %v334 = vrot.slane %v68, %v333
    %v335 = vadd.f32 %v329, %v334
    %v336 = vadd.f32 %v330, %v334
    %v337 = vmul.f32 %v335, 0.5
    %v338 = vmul.f32 %v336, 0.5
    %v339 = vmul.f32 %v335, 0.70710677
    %v340 = vmul.f32 %v336, 0.70710677
    %v341 = verf.f32.pop %v339
    %v342 = verf.f32.pop %v340
    %v343 = vadd.f32 %v341, 1.0
    %v344 = vadd.f32 %v342, 1.0
    %v345 = vmul.f32 %v337, %v343
    %v346 = vmul.f32 %v338, %v344
    %v347 = vpack.c.bf16 %v346, %v345
    %v348 = vld [vmem:[#allocation6] sm:$0xf]
    %v349 = vld [vmem:[#allocation6 + $0x4] sm:$0xf]
    %v350 = vld [vmem:[#allocation6 + $0x8] sm:$0xf]
    %v351 = vld [vmem:[#allocation6 + $0xc] sm:$0xf]
    %v352 = vld [vmem:[#allocation6 + $0x10] sm:$0xf]
    %v353 = vld [vmem:[#allocation6 + $0x14] sm:$0xf]
    %v354 = vld [vmem:[#allocation6 + $0x18] sm:$0xf]
    %v355 = vld [vmem:[#allocation6 + $0x1c] sm:$0xf]
    %v356 = vld [vmem:[#allocation6 + $0x20] sm:$0xf]
    %v357 = vld [vmem:[#allocation6 + $0x24] sm:$0xf]
    %v358 = vld [vmem:[#allocation6 + $0x28] sm:$0xf]
    %v359 = vld [vmem:[#allocation6 + $0x2c] sm:$0xf]
    %v360 = vld [vmem:[#allocation6 + $0x30] sm:$0xf]
    %v361 = vld [vmem:[#allocation6 + $0x34] sm:$0xf]
    %v362 = vld [vmem:[#allocation6 + $0x38] sm:$0xf]
    %v363 = vld [vmem:[#allocation6 + $0x3c] sm:$0xf]
    %v364 = vlaneseq
    %v365 = vshrl.u32 %v364, 7
    %v366 = vsub.s32 0, %v365
    %v367 = vrot.slane %v69, %v366
    %v384 = vunpack.c.l.b16 %v348
    %v385 = vunpack.c.l.b16 %v349
    %v386 = vunpack.c.l.b16 %v350
    %v387 = vunpack.c.l.b16 %v351
    %v388 = vunpack.c.l.b16 %v352
    %v389 = vunpack.c.l.b16 %v353
    %v390 = vunpack.c.l.b16 %v354
    %v391 = vunpack.c.l.b16 %v355
    %v392 = vunpack.c.l.b16 %v356
    %v393 = vunpack.c.l.b16 %v357
    %v394 = vunpack.c.l.b16 %v358
    %v395 = vunpack.c.l.b16 %v359
    %v396 = vunpack.c.l.b16 %v360
    %v397 = vunpack.c.l.b16 %v361
    %v398 = vunpack.c.l.b16 %v362
    %v399 = vunpack.c.l.b16 %v363
    %v400 = vpack.c.b16 %v385, %v384
    %v401 = vpack.c.b16 %v387, %v386
    %v402 = vpack.c.b16 %v389, %v388
    %v403 = vpack.c.b16 %v391, %v390
    %v404 = vpack.c.b16 %v393, %v392
    %v405 = vpack.c.b16 %v395, %v394
    %v406 = vpack.c.b16 %v397, %v396
    %v407 = vpack.c.b16 %v399, %v398
    %416 = vmatprep.subr.bf16.mxu0 0
    %417 = vmatpush1.bf16.msra.mxu0 %v400
    %418 = vmatprep.subr.bf16.mxu0 0
    %419 = vmatpush1.bf16.msra.mxu0 %v401
    %420 = vmatprep.subr.bf16.mxu0 0
    %421 = vmatpush1.bf16.msra.mxu0 %v402
    %422 = vmatprep.subr.bf16.mxu0 0
    %423 = vmatpush1.bf16.msra.mxu0 %v403
    %424 = vmatprep.subr.bf16.mxu0 0
    %425 = vmatpush1.bf16.msra.mxu0 %v404
    %426 = vmatprep.subr.bf16.mxu0 0
    %427 = vmatpush1.bf16.msra.mxu0 %v405
    %428 = vmatprep.subr.bf16.mxu0 0
    %429 = vmatpush1.bf16.msra.mxu0 %v406
    %430 = vmatprep.subr.bf16.mxu0 0
    %431 = vmatpush1.bf16.msra.mxu0 %v407
    %432 = vmatprep.subr.bf16.mxu0 0
    %433 = vmatpush1.bf16.msra.mxu0 0
    %434 = vmatprep.subr.bf16.mxu0 0
    %435 = vmatpush1.bf16.msra.mxu0 0
    %436 = vmatprep.subr.bf16.mxu0 0
    %437 = vmatpush1.bf16.msra.mxu0 0
    %438 = vmatprep.subr.bf16.mxu0 0
    %439 = vmatpush1.bf16.msra.mxu0 0
    %440 = vmatprep.subr.bf16.mxu0 0
    %441 = vmatpush1.bf16.msra.mxu0 0
    %442 = vmatprep.subr.bf16.mxu0 0
    %443 = vmatpush1.bf16.msra.mxu0 0
    %444 = vmatprep.subr.bf16.mxu0 0
    %445 = vmatpush1.bf16.msra.mxu0 0
    %446 = vmatprep.subr.bf16.mxu0 0
    %447 = vmatpush1.bf16.msra.mxu0 0
    %448 = vmatprep.mubr.bf16.mxu0 0
    %449 = vmatmul.mubr.bf16.gmra.mrb[0].mxu0 %v347
    %v450 = vpop.f32.mrb[0].mxu0
    %v451 = vadd.f32 %v367, %v450
    %v452 = vpop.f32.mrb[0].mxu0
    %v453 = vpop.f32.mrb[0].mxu0
    %v454 = vadd.f32 %v367, %v453
    %v455 = vpop.f32.mrb[0].mxu0
    %456 = vdwg.mxu0
    %457 = vst [vmem:[%s6] sm:$0xff] %v451
    %458 = vst [vmem:[%s6 + $0x8] sm:$0xff] %v454
    // Predicated region
    $region38: #{_expert_forward_impl.1} parent=1 // pred_check
      _
    $region39: #{_expert_forward_impl.1} parent=1 // pred_check_branch
      %460 = sbr.rel (0) target = $region41
    $region40: #{_expert_forward_impl.1} parent=1 // pred_region
      _
    $region41: #{_expert_forward_impl.1} parent=1 // pred_fallthru
      _
    // Predicated region
    $region42: #{_expert_forward_impl.1} parent=1 // pred_check
      _
    $region43: #{_expert_forward_impl.1} parent=1 // pred_check_branch
      %462 = sbr.rel (0) target = $region45
    $region44: #{_expert_forward_impl.1} parent=1 // pred_region
      _
    $region45: #{_expert_forward_impl.1} parent=1 // pred_fallthru
      _
    %463 = vsyncpa [#allocation3], 1
    %464 = vsyncpa [#allocation5], 1

</llo_original>
